<compile_context>
chip_gen: v5e
topology: v5e:2x2
jax: 0.10.0
libtpu: 0.0.40
codegen_flags: <defaults>
</compile_context>

<pallas_src>
import functools

import jax
import jax.numpy as jnp
from jax.experimental import pallas as pl
from jax.experimental.pallas import tpu as pltpu


def double_conv_kernel(x_ref, w1_ref, t1_ref, w2_ref, t2_ref, o_ref, *,
                       W, Nb, tap_dtype):
    """Nb batch elements per grid step.  All activations are (C, H*W).

    x_ref : (Nb, Cin, HW)      input tile (Cin = in_ch + mid_ch)
    w1_ref: (Cmid, Cin)        1x1 conv weight, BN1 scale folded in
    t1_ref: (Cmid, 1)          folded conv1-bias + BN1 shift (f32)
    w2_ref: (Cout, 9*Cmid)     3x3 conv weight, tap-major, BN2 scale folded in
    t2_ref: (Cout, 1)          folded conv2-bias + BN2 shift (f32)
    o_ref : (Nb, Cout, HW)     output tile (lane-dense spatial axis)
    """
    Cmid = w1_ref.shape[0]
    HW = x_ref.shape[2]
    cd = w2_ref.dtype                        # matmul input dtype (f32 / bf16)

    # Lane-aligned halo pad: h lands at a 128-aligned lane offset inside hp, so
    # the concat is a plain placement (no full-array XLU lane rotate).  Pz >=
    # W+1 also guarantees all row-out-of-bounds tap reads land in the zero pad.
    Pz = ((W + 1 + 127) // 128) * 128

    # Batch-invariant pieces, hoisted out of the Nb loop.
    col = jax.lax.broadcasted_iota(jnp.int32, (1, HW), 1) % W
    not_left = (col != 0).astype(tap_dtype)          # valid when x-1 >= 0
    not_right = (col != (W - 1)).astype(tap_dtype)   # valid when x+1 <  W
    z = jnp.zeros((Cmid, Pz), tap_dtype)

    for n in range(Nb):                      # static unroll, Nb is small
        x = x_ref[n]                         # (Cin, HW)

        # ---- conv1 (1x1) + folded bias/BN + ReLU: one MXU matmul, f32 acc ----
        h32 = jnp.dot(w1_ref[...], x, preferred_element_type=jnp.float32)
        h32 = jnp.maximum(h32 + t1_ref[...], 0.0)    # (Cmid, HW), f32 epilogue
        h = h32.astype(tap_dtype)            # cast once on (Cmid, HW), not 9x

        # ---- conv2 (3x3, pad=1) as a single im2col matmul (K = 9*Cmid) ----
        hp = jnp.concatenate([z, h, z], axis=1)      # (Cmid, HW + 2*Pz)

        taps = []
        for dy in (-1, 0, 1):                # static unroll, tap-major
            for dx in (-1, 0, 1):
                d = dy * W + dx
                sh = hp[:, Pz + d: Pz + d + HW]      # sh[p] = h[p+d] (0 if OOB row)
                if dx == -1:
                    sh = sh * not_left
                elif dx == 1:
                    sh = sh * not_right
                taps.append(sh)
        patches = jnp.concatenate(taps, axis=0).astype(cd)   # (9*Cmid, HW)

        y = jnp.dot(w2_ref[...], patches, preferred_element_type=jnp.float32)
        y = jnp.maximum(y + t2_ref[...], 0.0)        # (Cout, HW), lane-dense
        o_ref[n] = y.astype(o_ref.dtype)


def _pick_batch_block(N, requested=None, max_nb=8):
    """Largest Nb <= max_nb dividing N that keeps grid length >= 2 (v7x TCs)."""
    if requested is not None:
        assert N % requested == 0, "batch_block must divide N"
        return requested
    candidates = [nb for nb in range(1, min(N, max_nb) + 1)
                  if N % nb == 0 and N // nb >= 2]
    return max(candidates) if candidates else 1


def double_conv_pallas(x_nchw, w1_hwio, b1, g1, be1, m1, v1,
                       w2_hwio, b2, g2, be2, m2, v2, eps,
                       compute_dtype=jnp.float32, tap_dtype=None,
                       out_dtype=jnp.float32, batch_block=None):
    """double_conv forward (eval-mode BatchNorm), NCHW in / NCHW out.

    compute_dtype: dtype of the matmul inputs (bf16 recommended on v6e/v7x).
    tap_dtype:     dtype for the tap-construction vector path; defaults to
                   compute_dtype.  On v5e pass jnp.float32 (no bf16 VPU).
    out_dtype:     output dtype (bf16 halves writeback bytes if downstream ok).
    """
    N, Cin, H, Wd = x_nchw.shape
    Cmid = w1_hwio.shape[-1]
    Cout = w2_hwio.shape[-1]
    HW = H * Wd
    if tap_dtype is None:
        tap_dtype = compute_dtype
    Nb = _pick_batch_block(N, batch_block)

    # ---- plain-JAX glue: fold conv bias + eval-mode BN into weight/shift ----
    s1 = g1 / jnp.sqrt(v1 + eps)
    t1 = (b1 * s1 + be1 - m1 * s1).reshape(Cmid, 1).astype(jnp.float32)
    w1t = (w1_hwio.reshape(Cin, Cmid) * s1).T.astype(compute_dtype)  # (Cmid,Cin)

    s2 = g2 / jnp.sqrt(v2 + eps)
    t2 = (b2 * s2 + be2 - m2 * s2).reshape(Cout, 1).astype(jnp.float32)
    w2t = jnp.transpose(w2_hwio * s2, (3, 0, 1, 2)).reshape(Cout, 9 * Cmid)
    w2t = w2t.astype(compute_dtype)                                  # (Cout,9*Cmid)

    # NCHW is already channel-major: a reshape gives the kernel layout.
    x3 = x_nchw.reshape(N, Cin, HW).astype(compute_dtype)

    kernel = functools.partial(double_conv_kernel, W=Wd, Nb=Nb,
                               tap_dtype=tap_dtype)
    out = pl.pallas_call(
        kernel,
        out_shape=jax.ShapeDtypeStruct((N, Cout, HW), out_dtype),
        grid_spec=pltpu.PrefetchScalarGridSpec(
            num_scalar_prefetch=0,
            grid=(N // Nb,),                 # parallel -> shards over v7x's 2 TCs
            in_specs=[
                pl.BlockSpec((Nb, Cin, HW), lambda n: (n, 0, 0)),
                pl.BlockSpec((Cmid, Cin), lambda n: (0, 0)),
                pl.BlockSpec((Cmid, 1), lambda n: (0, 0)),
                pl.BlockSpec((Cout, 9 * Cmid), lambda n: (0, 0)),
                pl.BlockSpec((Cout, 1), lambda n: (0, 0)),
            ],
            out_specs=pl.BlockSpec((Nb, Cout, HW), lambda n: (n, 0, 0)),
        ),
        compiler_params=pltpu.CompilerParams(
            dimension_semantics=("parallel",)),
    )(x3, w1t, t1, w2t, t2)
    return out.reshape(N, Cout, H, Wd)       # NCHW, no transpose needed


def reference_forward(x_nhwc, w1_hwio, b1, g1, be1, m1, v1,
                      w2_hwio, b2, g2, be2, m2, v2, eps):
    dn = ('NHWC', 'HWIO', 'NHWC')
    y = jax.lax.conv_general_dilated(x_nhwc, w1_hwio, (1, 1), 'SAME',
                                     dimension_numbers=dn) + b1
    y = (y - m1) / jnp.sqrt(v1 + eps) * g1 + be1
    y = jnp.maximum(y, 0.0)
    y = jax.lax.conv_general_dilated(y, w2_hwio, (1, 1), 'SAME',
                                     dimension_numbers=dn) + b2
    y = (y - m2) / jnp.sqrt(v2 + eps) * g2 + be2
    y = jnp.maximum(y, 0.0)
    return y


if __name__ == "__main__":
    # double_conv(in_ch=4, mid_ch=8, out_ch=16): conv1 input has in_ch+mid_ch.
    in_ch, mid_ch, out_ch = 4, 8, 16
    N, H, W = 4, 16, 16                      # N=4 -> Nb=2, grid=2 (v7x-friendly)
    Cin = in_ch + mid_ch
    eps = 1e-5

    key = jax.random.PRNGKey(0)
    ks = jax.random.split(key, 13)

    # PyTorch NCHW input.
    x_nchw = jax.random.normal(ks[0], (N, Cin, H, W), jnp.float32)

    # Deterministic parameter init (shapes per nn.Conv2d / nn.BatchNorm2d).
    w1_hwio = jax.random.normal(ks[1], (1, 1, Cin, mid_ch), jnp.float32) * 0.2
    b1 = jax.random.normal(ks[2], (mid_ch,), jnp.float32) * 0.1
    g1 = 1.0 + 0.1 * jax.random.normal(ks[3], (mid_ch,), jnp.float32)
    be1 = 0.1 * jax.random.normal(ks[4], (mid_ch,), jnp.float32)
    m1 = 0.1 * jax.random.normal(ks[5], (mid_ch,), jnp.float32)
    v1 = jax.random.uniform(ks[6], (mid_ch,), jnp.float32, 0.5, 1.5)

    w2_hwio = jax.random.normal(ks[7], (3, 3, mid_ch, out_ch), jnp.float32) * 0.1
    b2 = jax.random.normal(ks[8], (out_ch,), jnp.float32) * 0.1
    g2 = 1.0 + 0.1 * jax.random.normal(ks[9], (out_ch,), jnp.float32)
    be2 = 0.1 * jax.random.normal(ks[10], (out_ch,), jnp.float32)
    m2 = 0.1 * jax.random.normal(ks[11], (out_ch,), jnp.float32)
    v2 = jax.random.uniform(ks[12], (out_ch,), jnp.float32, 0.5, 1.5)

    # Reference (test-only glue: lax conv wants NHWC).
    x_nhwc = jnp.transpose(x_nchw, (0, 2, 3, 1))
    ref_nhwc = reference_forward(x_nhwc, w1_hwio, b1, g1, be1, m1, v1,
                                 w2_hwio, b2, g2, be2, m2, v2, eps)
    ref_nchw = jnp.transpose(jax.block_until_ready(ref_nhwc), (0, 3, 1, 2))

    # f32 matmul + tap path (v5e-friendly; tight tolerance).
    out_nchw = double_conv_pallas(x_nchw, w1_hwio, b1, g1, be1, m1, v1,
                                  w2_hwio, b2, g2, be2, m2, v2, eps)
    out_nchw = jax.block_until_ready(out_nchw)
    assert out_nchw.shape == (N, out_ch, H, W)
    assert jnp.allclose(out_nchw, ref_nchw, rtol=1e-3, atol=1e-3), (
        float(jnp.max(jnp.abs(out_nchw - ref_nchw))))

    # bf16 matmul inputs + early-cast bf16 tap path + bf16 output
    # (recommended for v6e/v7x); f32 accumulate and f32 epilogue throughout.
    out_bf16 = double_conv_pallas(x_nchw, w1_hwio, b1, g1, be1, m1, v1,
                                  w2_hwio, b2, g2, be2, m2, v2, eps,
                                  compute_dtype=jnp.bfloat16,
                                  out_dtype=jnp.bfloat16)
    out_bf16 = jax.block_until_ready(out_bf16).astype(jnp.float32)
    assert jnp.allclose(out_bf16, ref_nchw, rtol=5e-2, atol=5e-2), (
        float(jnp.max(jnp.abs(out_bf16 - ref_nchw))))

    print("KERNEL_OK")
</pallas_src>

<mosaic_0001>
module attributes {stable_mosaic.version = 11 : i64} {
  func.func @double_conv_kernel(%arg0: i32, %arg1: memref<2x12x256xf32, #tpu.memory_space<vmem>>, %arg2: memref<8x12xf32, #tpu.memory_space<vmem>>, %arg3: memref<8x1xf32, #tpu.memory_space<vmem>>, %arg4: memref<16x72xf32, #tpu.memory_space<vmem>>, %arg5: memref<16x1xf32, #tpu.memory_space<vmem>>, %arg6: memref<2x16x256xf32, #tpu.memory_space<vmem>>) attributes {dimension_semantics = [#tpu.dimension_semantics<parallel>], iteration_bounds = array<i64: 2>, scalar_prefetch = 0 : i64, scratch_operands = 0 : i64, tpu.core_type = #tpu.core_type<tc>, window_params = [{transform_indices = @transform_0, window_bounds = array<i64: 2, 12, 256>}, {pipeline_mode = #tpu.pipeline_mode<synchronous>, transform_indices = @transform_1, window_bounds = array<i64: 8, 12>}, {pipeline_mode = #tpu.pipeline_mode<synchronous>, transform_indices = @transform_2, window_bounds = array<i64: 8, 1>}, {pipeline_mode = #tpu.pipeline_mode<synchronous>, transform_indices = @transform_3, window_bounds = array<i64: 16, 72>}, {pipeline_mode = #tpu.pipeline_mode<synchronous>, transform_indices = @transform_4, window_bounds = array<i64: 16, 1>}, {transform_indices = @transform_5, window_bounds = array<i64: 2, 16, 256>}]} {
    %0 = tpu.iota {dimensions = array<i32: 1>} : vector<1x256xi32>
    %c16_i32 = arith.constant 16 : i32
    %c0_i32 = arith.constant 0 : i32
    %1 = arith.cmpi eq, %c16_i32, %c0_i32 : i32
    %c1_i32 = arith.constant 1 : i32
    %2 = arith.select %1, %c1_i32, %c16_i32 : i32
    %3 = vector.broadcast %2 : i32 to vector<1x256xi32>
    %4 = arith.remsi %0, %3 : vector<1x256xi32>
    %c0_i32_0 = arith.constant 0 : i32
    %5 = vector.broadcast %c0_i32_0 : i32 to vector<1x256xi32>
    %6 = arith.cmpi ne, %4, %5 : vector<1x256xi32>
    %c0_i32_1 = arith.constant 0 : i32
    %7 = vector.broadcast %c0_i32_1 : i32 to vector<1x256xi32>
    %8 = arith.cmpi slt, %4, %7 : vector<1x256xi32>
    %c0_i32_2 = arith.constant 0 : i32
    %9 = arith.cmpi slt, %2, %c0_i32_2 : i32
    %10 = vector.broadcast %9 : i1 to vector<1x256xi1>
    %11 = vector.broadcast %10 : vector<1x256xi1> to vector<1x256xi1>
    %12 = arith.xori %8, %11 : vector<1x256xi1>
    %13 = arith.andi %12, %6 : vector<1x256xi1>
    %14 = vector.broadcast %2 : i32 to vector<1x256xi32>
    %15 = arith.addi %4, %14 : vector<1x256xi32>
    %16 = arith.select %13, %15, %4 : vector<1x256xi1>, vector<1x256xi32>
    %c0_i32_3 = arith.constant 0 : i32
    %17 = vector.broadcast %c0_i32_3 : i32 to vector<1x256xi32>
    %18 = arith.cmpi ne, %16, %17 : vector<1x256xi32>
    %19 = arith.extui %18 : vector<1x256xi1> to vector<1x256xi32>
    %20 = arith.sitofp %19 : vector<1x256xi32> to vector<1x256xf32>
    %c15_i32 = arith.constant 15 : i32
    %21 = vector.broadcast %c15_i32 : i32 to vector<1x256xi32>
    %22 = arith.cmpi ne, %16, %21 : vector<1x256xi32>
    %23 = arith.extui %22 : vector<1x256xi1> to vector<1x256xi32>
    %24 = arith.sitofp %23 : vector<1x256xi32> to vector<1x256xf32>
    %cst = arith.constant 0.000000e+00 : f32
    %25 = vector.broadcast %cst : f32 to vector<8x128xf32>
    %c0 = arith.constant 0 : index
    %c0_4 = arith.constant 0 : index
    %c0_5 = arith.constant 0 : index
    %26 = vector.load %arg1[%c0, %c0_4, %c0_5] : memref<2x12x256xf32, #tpu.memory_space<vmem>>, vector<1x12x256xf32>
    %27 = vector.shape_cast %26 : vector<1x12x256xf32> to vector<12x256xf32>
    %c0_6 = arith.constant 0 : index
    %c0_7 = arith.constant 0 : index
    %28 = vector.load %arg2[%c0_6, %c0_7] : memref<8x12xf32, #tpu.memory_space<vmem>>, vector<8x12xf32>
    %cst_8 = arith.constant dense<0.000000e+00> : vector<8x256xf32>
    %29 = tpu.matmul %28, %27, %cst_8 {dimension_numbers = #tpu.dot_dimension_numbers<[1], [0], [0], [1], [0, 0, 1, 1], [], []>} : vector<8x12xf32>, vector<12x256xf32>, vector<8x256xf32> -> vector<8x256xf32>
    %c0_9 = arith.constant 0 : index
    %c0_10 = arith.constant 0 : index
    %30 = vector.load %arg3[%c0_9, %c0_10] : memref<8x1xf32, #tpu.memory_space<vmem>>, vector<8x1xf32>
    %31 = vector.broadcast %30 : vector<8x1xf32> to vector<8x256xf32>
    %32 = arith.addf %29, %31 : vector<8x256xf32>
    %cst_11 = arith.constant 0.000000e+00 : f32
    %33 = vector.broadcast %cst_11 : f32 to vector<8x256xf32>
    %34 = arith.maximumf %32, %33 : vector<8x256xf32>
    %35 = tpu.concatenate %25, %34, %25 in 1 : vector<8x128xf32>, vector<8x256xf32>, vector<8x128xf32> -> vector<8x512xf32>
    %36 = vector.extract_strided_slice %35 {offsets = [0, 111], sizes = [8, 256], strides = [1, 1]} : vector<8x512xf32> to vector<8x256xf32>
    %37 = vector.broadcast %20 : vector<1x256xf32> to vector<8x256xf32>
    %38 = arith.mulf %36, %37 : vector<8x256xf32>
    %39 = vector.extract_strided_slice %35 {offsets = [0, 112], sizes = [8, 256], strides = [1, 1]} : vector<8x512xf32> to vector<8x256xf32>
    %40 = vector.extract_strided_slice %35 {offsets = [0, 113], sizes = [8, 256], strides = [1, 1]} : vector<8x512xf32> to vector<8x256xf32>
    %41 = vector.broadcast %24 : vector<1x256xf32> to vector<8x256xf32>
    %42 = arith.mulf %40, %41 : vector<8x256xf32>
    %43 = vector.extract_strided_slice %35 {offsets = [0, 127], sizes = [8, 256], strides = [1, 1]} : vector<8x512xf32> to vector<8x256xf32>
    %44 = vector.broadcast %20 : vector<1x256xf32> to vector<8x256xf32>
    %45 = arith.mulf %43, %44 : vector<8x256xf32>
    %46 = vector.extract_strided_slice %35 {offsets = [0, 128], sizes = [8, 256], strides = [1, 1]} : vector<8x512xf32> to vector<8x256xf32>
    %47 = vector.extract_strided_slice %35 {offsets = [0, 129], sizes = [8, 256], strides = [1, 1]} : vector<8x512xf32> to vector<8x256xf32>
    %48 = vector.broadcast %24 : vector<1x256xf32> to vector<8x256xf32>
    %49 = arith.mulf %47, %48 : vector<8x256xf32>
    %50 = vector.extract_strided_slice %35 {offsets = [0, 143], sizes = [8, 256], strides = [1, 1]} : vector<8x512xf32> to vector<8x256xf32>
    %51 = vector.broadcast %20 : vector<1x256xf32> to vector<8x256xf32>
    %52 = arith.mulf %50, %51 : vector<8x256xf32>
    %53 = vector.extract_strided_slice %35 {offsets = [0, 144], sizes = [8, 256], strides = [1, 1]} : vector<8x512xf32> to vector<8x256xf32>
    %54 = vector.extract_strided_slice %35 {offsets = [0, 145], sizes = [8, 256], strides = [1, 1]} : vector<8x512xf32> to vector<8x256xf32>
    %55 = vector.broadcast %24 : vector<1x256xf32> to vector<8x256xf32>
    %56 = arith.mulf %54, %55 : vector<8x256xf32>
    %57 = tpu.concatenate %38, %39, %42, %45, %46, %49, %52, %53, %56 in 0 : vector<8x256xf32>, vector<8x256xf32>, vector<8x256xf32>, vector<8x256xf32>, vector<8x256xf32>, vector<8x256xf32>, vector<8x256xf32>, vector<8x256xf32>, vector<8x256xf32> -> vector<72x256xf32>
    %c0_12 = arith.constant 0 : index
    %c0_13 = arith.constant 0 : index
    %58 = vector.load %arg4[%c0_12, %c0_13] : memref<16x72xf32, #tpu.memory_space<vmem>>, vector<16x72xf32>
    %cst_14 = arith.constant dense<0.000000e+00> : vector<16x256xf32>
    %59 = tpu.matmul %58, %57, %cst_14 {dimension_numbers = #tpu.dot_dimension_numbers<[1], [0], [0], [1], [0, 0, 1, 1], [], []>} : vector<16x72xf32>, vector<72x256xf32>, vector<16x256xf32> -> vector<16x256xf32>
    %c0_15 = arith.constant 0 : index
    %c0_16 = arith.constant 0 : index
    %60 = vector.load %arg5[%c0_15, %c0_16] : memref<16x1xf32, #tpu.memory_space<vmem>>, vector<16x1xf32>
    %61 = vector.broadcast %60 : vector<16x1xf32> to vector<16x256xf32>
    %62 = arith.addf %59, %61 : vector<16x256xf32>
    %cst_17 = arith.constant 0.000000e+00 : f32
    %63 = vector.broadcast %cst_17 : f32 to vector<16x256xf32>
    %64 = arith.maximumf %62, %63 : vector<16x256xf32>
    %c0_18 = arith.constant 0 : index
    %c0_19 = arith.constant 0 : index
    %c0_20 = arith.constant 0 : index
    %65 = vector.load %arg6[%c0_18, %c0_19, %c0_20] : memref<2x16x256xf32, #tpu.memory_space<vmem>>, vector<1x16x256xf32>
    %66 = vector.shape_cast %65 : vector<1x16x256xf32> to vector<16x256xf32>
    %67 = vector.shape_cast %64 : vector<16x256xf32> to vector<1x16x256xf32>
    tpu.vector_store %arg6[%c0_18, %c0_19, %c0_20], %67 {strides = array<i32>} : memref<2x16x256xf32, #tpu.memory_space<vmem>>, vector<1x16x256xf32>,
    %c1 = arith.constant 1 : index
    %c0_21 = arith.constant 0 : index
    %c0_22 = arith.constant 0 : index
    %68 = vector.load %arg1[%c1, %c0_21, %c0_22] : memref<2x12x256xf32, #tpu.memory_space<vmem>>, vector<1x12x256xf32>
    %69 = vector.shape_cast %68 : vector<1x12x256xf32> to vector<12x256xf32>
    %c0_23 = arith.constant 0 : index
    %c0_24 = arith.constant 0 : index
    %70 = vector.load %arg2[%c0_23, %c0_24] : memref<8x12xf32, #tpu.memory_space<vmem>>, vector<8x12xf32>
    %cst_25 = arith.constant dense<0.000000e+00> : vector<8x256xf32>
    %71 = tpu.matmul %70, %69, %cst_25 {dimension_numbers = #tpu.dot_dimension_numbers<[1], [0], [0], [1], [0, 0, 1, 1], [], []>} : vector<8x12xf32>, vector<12x256xf32>, vector<8x256xf32> -> vector<8x256xf32>
    %c0_26 = arith.constant 0 : index
    %c0_27 = arith.constant 0 : index
    %72 = vector.load %arg3[%c0_26, %c0_27] : memref<8x1xf32, #tpu.memory_space<vmem>>, vector<8x1xf32>
    %73 = vector.broadcast %72 : vector<8x1xf32> to vector<8x256xf32>
    %74 = arith.addf %71, %73 : vector<8x256xf32>
    %cst_28 = arith.constant 0.000000e+00 : f32
    %75 = vector.broadcast %cst_28 : f32 to vector<8x256xf32>
    %76 = arith.maximumf %74, %75 : vector<8x256xf32>
    %77 = tpu.concatenate %25, %76, %25 in 1 : vector<8x128xf32>, vector<8x256xf32>, vector<8x128xf32> -> vector<8x512xf32>
    %78 = vector.extract_strided_slice %77 {offsets = [0, 111], sizes = [8, 256], strides = [1, 1]} : vector<8x512xf32> to vector<8x256xf32>
    %79 = vector.broadcast %20 : vector<1x256xf32> to vector<8x256xf32>
    %80 = arith.mulf %78, %79 : vector<8x256xf32>
    %81 = vector.extract_strided_slice %77 {offsets = [0, 112], sizes = [8, 256], strides = [1, 1]} : vector<8x512xf32> to vector<8x256xf32>
    %82 = vector.extract_strided_slice %77 {offsets = [0, 113], sizes = [8, 256], strides = [1, 1]} : vector<8x512xf32> to vector<8x256xf32>
    %83 = vector.broadcast %24 : vector<1x256xf32> to vector<8x256xf32>
    %84 = arith.mulf %82, %83 : vector<8x256xf32>
    %85 = vector.extract_strided_slice %77 {offsets = [0, 127], sizes = [8, 256], strides = [1, 1]} : vector<8x512xf32> to vector<8x256xf32>
    %86 = vector.broadcast %20 : vector<1x256xf32> to vector<8x256xf32>
    %87 = arith.mulf %85, %86 : vector<8x256xf32>
    %88 = vector.extract_strided_slice %77 {offsets = [0, 128], sizes = [8, 256], strides = [1, 1]} : vector<8x512xf32> to vector<8x256xf32>
    %89 = vector.extract_strided_slice %77 {offsets = [0, 129], sizes = [8, 256], strides = [1, 1]} : vector<8x512xf32> to vector<8x256xf32>
    %90 = vector.broadcast %24 : vector<1x256xf32> to vector<8x256xf32>
    %91 = arith.mulf %89, %90 : vector<8x256xf32>
    %92 = vector.extract_strided_slice %77 {offsets = [0, 143], sizes = [8, 256], strides = [1, 1]} : vector<8x512xf32> to vector<8x256xf32>
    %93 = vector.broadcast %20 : vector<1x256xf32> to vector<8x256xf32>
    %94 = arith.mulf %92, %93 : vector<8x256xf32>
    %95 = vector.extract_strided_slice %77 {offsets = [0, 144], sizes = [8, 256], strides = [1, 1]} : vector<8x512xf32> to vector<8x256xf32>
    %96 = vector.extract_strided_slice %77 {offsets = [0, 145], sizes = [8, 256], strides = [1, 1]} : vector<8x512xf32> to vector<8x256xf32>
    %97 = vector.broadcast %24 : vector<1x256xf32> to vector<8x256xf32>
    %98 = arith.mulf %96, %97 : vector<8x256xf32>
    %99 = tpu.concatenate %80, %81, %84, %87, %88, %91, %94, %95, %98 in 0 : vector<8x256xf32>, vector<8x256xf32>, vector<8x256xf32>, vector<8x256xf32>, vector<8x256xf32>, vector<8x256xf32>, vector<8x256xf32>, vector<8x256xf32>, vector<8x256xf32> -> vector<72x256xf32>
    %c0_29 = arith.constant 0 : index
    %c0_30 = arith.constant 0 : index
    %100 = vector.load %arg4[%c0_29, %c0_30] : memref<16x72xf32, #tpu.memory_space<vmem>>, vector<16x72xf32>
    %cst_31 = arith.constant dense<0.000000e+00> : vector<16x256xf32>
    %101 = tpu.matmul %100, %99, %cst_31 {dimension_numbers = #tpu.dot_dimension_numbers<[1], [0], [0], [1], [0, 0, 1, 1], [], []>} : vector<16x72xf32>, vector<72x256xf32>, vector<16x256xf32> -> vector<16x256xf32>
    %c0_32 = arith.constant 0 : index
    %c0_33 = arith.constant 0 : index
    %102 = vector.load %arg5[%c0_32, %c0_33] : memref<16x1xf32, #tpu.memory_space<vmem>>, vector<16x1xf32>
    %103 = vector.broadcast %102 : vector<16x1xf32> to vector<16x256xf32>
    %104 = arith.addf %101, %103 : vector<16x256xf32>
    %cst_34 = arith.constant 0.000000e+00 : f32
    %105 = vector.broadcast %cst_34 : f32 to vector<16x256xf32>
    %106 = arith.maximumf %104, %105 : vector<16x256xf32>
    %c1_35 = arith.constant 1 : index
    %c0_36 = arith.constant 0 : index
    %c0_37 = arith.constant 0 : index
    %107 = vector.load %arg6[%c1_35, %c0_36, %c0_37] : memref<2x16x256xf32, #tpu.memory_space<vmem>>, vector<1x16x256xf32>
    %108 = vector.shape_cast %107 : vector<1x16x256xf32> to vector<16x256xf32>
    %109 = vector.shape_cast %106 : vector<16x256xf32> to vector<1x16x256xf32>
    tpu.vector_store %arg6[%c1_35, %c0_36, %c0_37], %109 {strides = array<i32>} : memref<2x16x256xf32, #tpu.memory_space<vmem>>, vector<1x16x256xf32>,
    return
  }
  func.func @transform_0(%arg0: i32) -> (i32, i32, i32) {
    %c0_i32 = arith.constant 0 : i32
    %c0_i32_0 = arith.constant 0 : i32
    %c0_i32_1 = arith.constant 0 : i32
    return %arg0, %c0_i32, %c0_i32_0 : i32, i32, i32
  }
  func.func @transform_1(%arg0: i32) -> (i32, i32) {
    %c0_i32 = arith.constant 0 : i32
    %c0_i32_0 = arith.constant 0 : i32
    %c0_i32_1 = arith.constant 0 : i32
    return %c0_i32, %c0_i32_0 : i32, i32
  }
  func.func @transform_2(%arg0: i32) -> (i32, i32) {
    %c0_i32 = arith.constant 0 : i32
    %c0_i32_0 = arith.constant 0 : i32
    %c0_i32_1 = arith.constant 0 : i32
    return %c0_i32, %c0_i32_0 : i32, i32
  }
  func.func @transform_3(%arg0: i32) -> (i32, i32) {
    %c0_i32 = arith.constant 0 : i32
    %c0_i32_0 = arith.constant 0 : i32
    %c0_i32_1 = arith.constant 0 : i32
    return %c0_i32, %c0_i32_0 : i32, i32
  }
  func.func @transform_4(%arg0: i32) -> (i32, i32) {
    %c0_i32 = arith.constant 0 : i32
    %c0_i32_0 = arith.constant 0 : i32
    %c0_i32_1 = arith.constant 0 : i32
    return %c0_i32, %c0_i32_0 : i32, i32
  }
  func.func @transform_5(%arg0: i32) -> (i32, i32, i32) {
    %c0_i32 = arith.constant 0 : i32
    %c0_i32_0 = arith.constant 0 : i32
    %c0_i32_1 = arith.constant 0 : i32
    return %arg0, %c0_i32, %c0_i32_0 : i32, i32, i32
  }
}

</mosaic_0001>

<llo_original>
// kernel: tpu_custom_call.1
$region0: #{tpu_custom_call.1}
  #allocation0 [shape = 'u32[]', space=smem, size = 0x4, offset = 0x4, fixed_abs, tag = 'smem constant byte address 0x4 - core index']
  #allocation1 [shape = 'u32[72,128]{1,0:T(1,128)}', space=vmem, size = 0x9000, scoped, tag = 'internal scratch']
  %s0 = inlined_call_operand.vmem [shape: f32[4,12,256], index: 0, kind: input, shape index: {}]
  %s1 = inlined_call_operand.vmem [shape: f32[8,12], index: 1, kind: input, shape index: {}]
  %s2 = inlined_call_operand.vmem [shape: f32[8,1], index: 2, kind: input, shape index: {}]
  %s3 = inlined_call_operand.vmem [shape: f32[16,72], index: 3, kind: input, shape index: {}]
  %s4 = inlined_call_operand.vmem [shape: f32[16,1], index: 4, kind: input, shape index: {}]
  %s5 = inlined_call_operand.hbm [shape: f32[4,16,256], index: 5, kind: output, shape index: {}]
  %s6 = sld [smem:[#allocation0]]
  $region53: #{tpu_custom_call.1} parent=0
    _
  %s8 = ssub.s32 1, %s6
  %s9 = scalar_select 0, %s8, %s6
  $region1: #{tpu_custom_call.1} parent=0
    #allocation2 [shape = 'u8[65536]{0}', space=vmem, size = 0x10000, scoped, tag = 'output window, operand 0']
    #allocation3 [shape = 's32[2]{0}', space=sflag, size = 0x8, scoped, tag = 'scoped memory for tpu_custom_call.1']
    %10 = vsyncpa [#allocation3], 0
    %s11 = scalar_lea.sflag [#allocation3], 1
    %12 = vsyncpa %s11, 0
    loop: start=0, step=1, limit=4
    $region2: #{tpu_custom_call.1} parent=1 // loop_pre_header
      _
    $region3: #{tpu_custom_call.1} parent=1 // loop_header
      %s14 = sphi 0, %s18
      %p15 = scmp.ge.s32.totalorder %s14, 4
      %s24 = sphi 0, %s26
      %s27 = sphi 0, %s24
      %s28 = sphi 0, %s27
      %s44 = sphi 0, %s28
      %s48 = sphi 0, %s48
      %s50 = sphi 0, %s48
      %s51 = sphi 0, %s50
      %s65 = sphi 0, %s51
      %s69 = sphi 0, %s69
      %s71 = sphi 0, %s69
      %s72 = sphi 0, %s71
      %s86 = sphi 0, %s72
      %s90 = sphi 0, %s90
      %s92 = sphi 0, %s90
      %s93 = sphi 0, %s92
      %s107 = sphi 0, %s93
      %s111 = sphi 0, %s111
      %s113 = sphi 0, %s111
      %s114 = sphi 0, %s113
      %s128 = sphi 0, %s114
      %s134 = sphi 0, %s136
      %s137 = sphi 0, %s134
      %s138 = sphi 0, %s137
      %s154 = sphi 0, %s138
    $region4: #{tpu_custom_call.1} parent=1 // loop_header_branch
      %17 = sbr.rel (%p15) target = $region8
    $region5: #{tpu_custom_call.1} parent=1 // loop_body
      %s19 = ssub.s32 %s14, 1
      %s20 = ssub.s32 %s14, 2
      %s21 = sadd.s32 %s14, 1
      %s22 = ssub.s32 %s14, %s21
      %p23 = scmp.eq.s32.totalorder %s22, 0
      %s25 = sadd.s32 %s24, 1
      %s26 = scalar_select %p23, %s24, %s25
      %p29 = pneg %p23
      %p30 = scmp.eq.s32.totalorder %s14, 1
      %p31 = por %p29, %p30
      %p32 = scmp.ne.s32.totalorder %s24, %s27
      %p33 = scmp.eq.s32.totalorder %s14, 0
      %p34 = por %p32, %p33
      %p35 = scmp.ne.s32.totalorder %s24, %s27
      %p36 = scmp.eq.s32.totalorder %s19, 1
      %p37 = por %p35, %p36
      %p38 = scmp.ne.s32.totalorder %s27, %s28
      %p39 = scmp.eq.s32.totalorder %s19, 0
      %p40 = por %p38, %p39
      %p41 = scmp.ne.s32.totalorder %s27, %s28
      %p42 = scmp.eq.s32.totalorder %s20, 1
      %p43 = por %p41, %p42
      %p45 = scmp.ne.s32.totalorder %s28, %s44
      %p46 = scmp.eq.s32.totalorder %s20, 0
      %p47 = por %p45, %p46
      %s49 = sadd.s32 %s48, 1
      %p52 = scmp.eq.s32.totalorder %s14, 1
      %p53 = scmp.ne.s32.totalorder %s48, %s50
      %p54 = scmp.eq.s32.totalorder %s14, 0
      %p55 = por %p53, %p54
      %p56 = scmp.ne.s32.totalorder %s48, %s50
      %p57 = scmp.eq.s32.totalorder %s19, 1
      %p58 = por %p56, %p57
      %p59 = scmp.ne.s32.totalorder %s50, %s51
      %p60 = scmp.eq.s32.totalorder %s19, 0
      %p61 = por %p59, %p60
      %p62 = scmp.ne.s32.totalorder %s50, %s51
      %p63 = scmp.eq.s32.totalorder %s20, 1
      %p64 = por %p62, %p63
      %p66 = scmp.ne.s32.totalorder %s51, %s65
      %p67 = scmp.eq.s32.totalorder %s20, 0
      %p68 = por %p66, %p67
      %s70 = sadd.s32 %s69, 1
      %p73 = scmp.eq.s32.totalorder %s14, 1
      %p74 = scmp.ne.s32.totalorder %s69, %s71
      %p75 = scmp.eq.s32.totalorder %s14, 0
      %p76 = por %p74, %p75
      %p77 = scmp.ne.s32.totalorder %s69, %s71
      %p78 = scmp.eq.s32.totalorder %s19, 1
      %p79 = por %p77, %p78
      %p80 = scmp.ne.s32.totalorder %s71, %s72
      %p81 = scmp.eq.s32.totalorder %s19, 0
      %p82 = por %p80, %p81
      %p83 = scmp.ne.s32.totalorder %s71, %s72
      %p84 = scmp.eq.s32.totalorder %s20, 1
      %p85 = por %p83, %p84
      %p87 = scmp.ne.s32.totalorder %s72, %s86
      %p88 = scmp.eq.s32.totalorder %s20, 0
      %p89 = por %p87, %p88
      %s91 = sadd.s32 %s90, 1
      %p94 = scmp.eq.s32.totalorder %s14, 1
      %p95 = scmp.ne.s32.totalorder %s90, %s92
      %p96 = scmp.eq.s32.totalorder %s14, 0
      %p97 = por %p95, %p96
      %p98 = scmp.ne.s32.totalorder %s90, %s92
      %p99 = scmp.eq.s32.totalorder %s19, 1
      %p100 = por %p98, %p99
      %p101 = scmp.ne.s32.totalorder %s92, %s93
      %p102 = scmp.eq.s32.totalorder %s19, 0
      %p103 = por %p101, %p102
      %p104 = scmp.ne.s32.totalorder %s92, %s93
      %p105 = scmp.eq.s32.totalorder %s20, 1
      %p106 = por %p104, %p105
      %p108 = scmp.ne.s32.totalorder %s93, %s107
      %p109 = scmp.eq.s32.totalorder %s20, 0
      %p110 = por %p108, %p109
      %s112 = sadd.s32 %s111, 1
      %p115 = scmp.eq.s32.totalorder %s14, 1
      %p116 = scmp.ne.s32.totalorder %s111, %s113
      %p117 = scmp.eq.s32.totalorder %s14, 0
      %p118 = por %p116, %p117
      %p119 = scmp.ne.s32.totalorder %s111, %s113
      %p120 = scmp.eq.s32.totalorder %s19, 1
      %p121 = por %p119, %p120
      %p122 = scmp.ne.s32.totalorder %s113, %s114
      %p123 = scmp.eq.s32.totalorder %s19, 0
      %p124 = por %p122, %p123
      %p125 = scmp.ne.s32.totalorder %s113, %s114
      %p126 = scmp.eq.s32.totalorder %s20, 1
      %p127 = por %p125, %p126
      %p129 = scmp.ne.s32.totalorder %s114, %s128
      %p130 = scmp.eq.s32.totalorder %s20, 0
      %p131 = por %p129, %p130
      %s132 = ssub.s32 %s14, %s21
      %p133 = scmp.eq.s32.totalorder %s132, 0
      %s135 = sadd.s32 %s134, 1
      %s136 = scalar_select %p133, %s134, %s135
      %p139 = pneg %p133
      %p140 = scmp.eq.s32.totalorder %s14, 1
      %p141 = por %p139, %p140
      %p142 = scmp.ne.s32.totalorder %s134, %s137
      %p143 = scmp.eq.s32.totalorder %s14, 0
      %p144 = por %p142, %p143
      %p145 = scmp.ne.s32.totalorder %s134, %s137
      %p146 = scmp.eq.s32.totalorder %s19, 1
      %p147 = por %p145, %p146
      %p148 = scmp.ne.s32.totalorder %s137, %s138
      %p149 = scmp.eq.s32.totalorder %s19, 0
      %p150 = por %p148, %p149
      %p151 = scmp.ne.s32.totalorder %s137, %s138
      %p152 = scmp.eq.s32.totalorder %s20, 1
      %p153 = por %p151, %p152
      %p155 = scmp.ne.s32.totalorder %s138, %s154
      %p156 = scmp.eq.s32.totalorder %s20, 0
      %p157 = por %p155, %p156
      %p158 = scmp.le.s32.totalorder 1, %s14
      %p159 = scmp.lt.s32.totalorder %s14, 3
      %p160 = pnand %p158, %p159
      %p161 = pneg %p160
      // Predicated region
      $region9: #{tpu_custom_call.1} parent=5 // pred_check
        _
      $region10: #{tpu_custom_call.1} parent=5 // pred_check_branch
        %163 = sbr.rel (%p160) target = $region12
      $region11: #{tpu_custom_call.1} parent=5 // pred_region
        %s164 = ssub.s32 %s14, 1
        // Predicated region
        $region13: #{tpu_custom_call.1} parent=11 // pred_check
          %p165 = pneg %p61
        $region14: #{tpu_custom_call.1} parent=11 // pred_check_branch
          %167 = sbr.rel (%p165) target = $region16
        $region15: #{tpu_custom_call.1} parent=11 // pred_region
          _
        $region16: #{tpu_custom_call.1} parent=11 // pred_fallthru
          _
        // Predicated region
        $region17: #{tpu_custom_call.1} parent=11 // pred_check
          %p168 = pneg %p82
        $region18: #{tpu_custom_call.1} parent=11 // pred_check_branch
          %170 = sbr.rel (%p168) target = $region20
        $region19: #{tpu_custom_call.1} parent=11 // pred_region
          _
        $region20: #{tpu_custom_call.1} parent=11 // pred_fallthru
          _
        // Predicated region
        $region21: #{tpu_custom_call.1} parent=11 // pred_check
          %p171 = pneg %p103
        $region22: #{tpu_custom_call.1} parent=11 // pred_check_branch
          %173 = sbr.rel (%p171) target = $region24
        $region23: #{tpu_custom_call.1} parent=11 // pred_region
          _
        $region24: #{tpu_custom_call.1} parent=11 // pred_fallthru
          _
        // Predicated region
        $region25: #{tpu_custom_call.1} parent=11 // pred_check
          %p174 = pneg %p124
        $region26: #{tpu_custom_call.1} parent=11 // pred_check_branch
          %176 = sbr.rel (%p174) target = $region28
        $region27: #{tpu_custom_call.1} parent=11 // pred_region
          _
        $region28: #{tpu_custom_call.1} parent=11 // pred_fallthru
          _
      $region12: #{tpu_custom_call.1} parent=5 // pred_fallthru
        _
      %p177 = scmp.lt.s32.totalorder %s14, 2
      // Predicated region
      $region29: #{tpu_custom_call.1} parent=5 // pred_check
        %p178 = pneg %p177
      $region30: #{tpu_custom_call.1} parent=5 // pred_check_branch
        %180 = sbr.rel (%p178) target = $region32
      $region31: #{tpu_custom_call.1} parent=5 // pred_region
        // Predicated region
        $region33: #{tpu_custom_call.1} parent=31 // pred_check
          %p181 = pneg %p34
        $region34: #{tpu_custom_call.1} parent=31 // pred_check_branch
          %183 = sbr.rel (%p181) target = $region36
        $region35: #{tpu_custom_call.1} parent=31 // pred_region
          %s184 = smul.u32 2, %s14
          %p185 = scmp.lt.s32.totalorder %s184, 3
          %s186 = scalar_select %p185, %s184, 3
          %s187 = smul.addr %s186, 4
          %s188 = smul.addr %s187, 8
          %s189 = scalar_lea.vmem %s0, %s188
          %s190 = smul.u32 2, %s14
        $region36: #{tpu_custom_call.1} parent=31 // pred_fallthru
          _
      $region32: #{tpu_custom_call.1} parent=5 // pred_fallthru
        _
      %p191 = scmp.le.s32.totalorder 1, %s14
      %p192 = scmp.lt.s32.totalorder %s14, 3
      %p193 = pnand %p191, %p192
      %p194 = pneg %p193
      // Predicated region
      $region37: #{tpu_custom_call.1} parent=5 // pred_check
        _
      $region38: #{tpu_custom_call.1} parent=5 // pred_check_branch
        %196 = sbr.rel (%p193) target = $region40
      $region39: #{tpu_custom_call.1} parent=5 // pred_region
        %s197 = ssub.s32 %s14, 1
        %s198 = smul.u32 2, %s19
        %p199 = scmp.lt.s32.totalorder %s198, 3
        %s200 = scalar_select %p199, %s198, 3
        %s201 = smul.addr %s200, 4
        %s202 = smul.addr %s201, 8
        %s203 = scalar_lea.vmem %s0, %s202
        %p204 = pneg %p40
        %p205 = pneg %p37
        %p206 = pneg %p61
        %p207 = pneg %p58
        %p208 = pneg %p82
        %p209 = pneg %p79
        %p210 = pneg %p103
        %p211 = pneg %p100
        %p212 = pneg %p124
        %p213 = pneg %p121
        %p214 = pneg %p150
        %p215 = pneg %p147
        %s216 = sand.u32 %s137, 1
        %s217 = scalar_lea.sflag [#allocation3], %s216
        %s218 = sand.u32 %s137, 1
        %s219 = smul.addr %s218, 64
        %s220 = scalar_lea.vmem [#allocation2], %s219
        %s221 = smul.u32 2, %s19
        %p222 = scmp.lt.s32.totalorder %s221, 3
        %s223 = scalar_select %p222, %s221, 3
        %s224 = smul.addr %s223, 4
        %s225 = smul.addr %s224, 8
        %s226 = scalar_lea.vmem %s0, %s225
        %s227 = smul.u32 2, %s19
        %s228 = smul.u32 2, %s19
        %v229 = vlaneseq
        %v230 = vand.u32 %v229, 127
        %v231 = vadd.s32 %v230, 128
        %vm232 = vcmp.lt.s32.totalorder %v230, 0
        %v233 = vsub.s32 0, %v230
        %v234 = vsel %vm232, %v233, %v230
        %v235 = vshrl.u32 %v234, 4
        %v236 = vand.u32 %v234, 15
        %v237 = vsub.s32 0, %v236
        %v238 = vsel %vm232, %v237, %v236
        %vm239 = vcmp.lt.s32.totalorder %v231, 0
        %v240 = vsub.s32 0, %v231
        %v241 = vsel %vm239, %v240, %v231
        %v242 = vshrl.u32 %v241, 4
        %v243 = vand.u32 %v241, 15
        %v244 = vsub.s32 0, %v243
        %v245 = vsel %vm239, %v244, %v243
        %vm246 = vcmp.ne.s32.totalorder %v238, 0
        %vm247 = vcmp.ne.s32.totalorder %v245, 0
        %vm248 = vcmp.lt.s32.totalorder %v238, 0
        %vm249 = vcmp.lt.s32.totalorder %v245, 0
        %vm250 = vmand %vm248, %vm246
        %vm251 = vmand %vm249, %vm247
        %v252 = vadd.s32 %v238, 16
        %v253 = vadd.s32 %v245, 16
        %v254 = vsel %vm250, %v252, %v238
        %v255 = vsel %vm251, %v253, %v245
        %vm256 = vcmp.ne.s32.totalorder %v254, 0
        %vm257 = vcmp.ne.s32.totalorder %v255, 0
        %v258 = vsel %vm256, 1, 0
        %v259 = vsel %vm257, 1, 0
        %v260 = vcvt.s32.f32 %v258
        %v261 = vcvt.s32.f32 %v259
        %vm262 = vcmp.ne.s32.totalorder %v254, 15
        %vm263 = vcmp.ne.s32.totalorder %v255, 15
        %v264 = vsel %vm262, 1, 0
        %v265 = vsel %vm263, 1, 0
        %v266 = vcvt.s32.f32 %v264
        %v267 = vcvt.s32.f32 %v265
        %v268 = vld [vmem:[%s226] sm:$0xff]
        %v269 = vld [vmem:[%s226 + $0x8] sm:$0xff]
        %v270 = vld [vmem:[%s226 + $0x10] sm:$0xf]
        %v271 = vld [vmem:[%s226 + $0x18] sm:$0xf]
        %v272 = vld [vmem:[%s1] sm:$0xff]
        %v273 = vld [vmem:[%s2] sm:$0xff]
        %275 = vset.pattern.permute.xlu0 0
        %276 = vperm.xlu0 %275, %v273
        %v277 = vpop.permute.xlu0 %276
        %vm279 = vcmask 97280
        %v281 = vsel %vm279, %v272, 0
        %vm283 = vcmask 1043456
        %v285 = vsel %vm283, %v270, 0
        %v288 = vsel %vm283, %v271, 0
        %290 = vmatpush.msra.mxu0 0.0
        %291 = vmatpush.msra.mxu0 0.0
        %292 = vmatpush.msra.mxu0 0.0
        %293 = vmatpush.msra.mxu0 0.0
        %294 = vmatpush.msra.mxu0 0.0
        %295 = vmatpush.msra.mxu0 0.0
        %296 = vmatpush.msra.mxu0 0.0
        %297 = vmatpush.msra.mxu0 0.0
        %298 = vmatpush.msra.mxu0 0.0
        %299 = vmatpush.msra.mxu0 0.0
        %300 = vmatpush.msra.mxu0 0.0
        %301 = vmatpush.msra.mxu0 0.0
        %302 = vmatpush.msra.mxu0 0.0
        %303 = vmatpush.msra.mxu0 0.0
        %304 = vmatpush.msra.mxu0 %v285
        %305 = vmatpush.msra.mxu0 %v268
        %306 = vmatmul.f32.gmra.mxu0 %v281
        %v307 = vpop.f32.mrf.mxu0
        %v308 = vadd.f32 %v277, %v307
        %309 = vdwg.mxu0
        %310 = vmatpush.msra.mxu0 0.0
        %311 = vmatpush.msra.mxu0 0.0
        %312 = vmatpush.msra.mxu0 0.0
        %313 = vmatpush.msra.mxu0 0.0
        %314 = vmatpush.msra.mxu0 0.0
        %315 = vmatpush.msra.mxu0 0.0
        %316 = vmatpush.msra.mxu0 0.0
        %317 = vmatpush.msra.mxu0 0.0
        %318 = vmatpush.msra.mxu0 0.0
        %319 = vmatpush.msra.mxu0 0.0
        %320 = vmatpush.msra.mxu0 0.0
        %321 = vmatpush.msra.mxu0 0.0
        %322 = vmatpush.msra.mxu0 0.0
        %323 = vmatpush.msra.mxu0 0.0
        %324 = vmatpush.msra.mxu0 %v288
        %325 = vmatpush.msra.mxu0 %v269
        %326 = vmatmul.f32.gmra.mxu0 %v281
        %v327 = vpop.f32.mrf.mxu0
        %v328 = vadd.f32 %v277, %v327
        %329 = vdwg.mxu0
        %v330 = vmax.f32 %v308, 0.0
        %v331 = vmax.f32 %v328, 0.0
        %334 = vrot.lane.b32.xlu0 %v260, 111
        %v335 = vpop.permute.xlu0 %334
        %336 = vrot.lane.b32.xlu0 %v261, 111
        %v337 = vpop.permute.xlu0 %336
        %vm338 = vcmask 908288
        %v339 = vsel %vm338, %v335, %v337
        %v343 = vmul.f32 %v335, 0.0
        %v344 = vmul.f32 %v330, %v339
        %v345 = vmul.f32 %v331, %v337
        %348 = vrot.lane.b32.xlu0 %v266, 113
        %v349 = vpop.permute.xlu0 %348
        %350 = vrot.lane.b32.xlu0 %v267, 113
        %v351 = vpop.permute.xlu0 %350
        %vm352 = vcmask 924672
        %v353 = vsel %vm352, %v349, %v351
        %v357 = vmul.f32 %v349, 0.0
        %v358 = vmul.f32 %v330, %v353
        %v359 = vmul.f32 %v331, %v351
        %360 = vrot.lane.b32.xlu0 %v260, 127
        %v361 = vpop.permute.xlu0 %360
        %362 = vrot.lane.b32.xlu0 %v261, 127
        %v363 = vpop.permute.xlu0 %362
        %vm364 = vcmask 1039360
        %v365 = vsel %vm364, %v361, %v363
        %v369 = vmul.f32 %v361, 0.0
        %v370 = vmul.f32 %v330, %v365
        %v371 = vmul.f32 %v331, %v363
        %372 = vrot.lane.b32.xlu0 %v266, 1
        %v373 = vpop.permute.xlu0 %372
        %374 = vrot.lane.b32.xlu0 %v267, 1
        %v375 = vpop.permute.xlu0 %374
        %vm376 = vcmask 7168
        %v377 = vsel %vm376, %v373, %v375
        %v381 = vmul.f32 %v330, %v373
        %v382 = vmul.f32 %v331, %v377
        %v383 = vmul.f32 %v375, 0.0
        %384 = vrot.lane.b32.xlu0 %v260, 15
        %v385 = vpop.permute.xlu0 %384
        %386 = vrot.lane.b32.xlu0 %v261, 15
        %v387 = vpop.permute.xlu0 %386
        %vm388 = vcmask 121856
        %v389 = vsel %vm388, %v385, %v387
        %v393 = vmul.f32 %v330, %v385
        %v394 = vmul.f32 %v331, %v389
        %v395 = vmul.f32 %v387, 0.0
        %396 = vrot.lane.b32.xlu0 %v266, 17
        %v397 = vpop.permute.xlu0 %396
        %398 = vrot.lane.b32.xlu0 %v267, 17
        %v399 = vpop.permute.xlu0 %398
        %vm400 = vcmask 138240
        %v401 = vsel %vm400, %v397, %v399
        %v405 = vmul.f32 %v330, %v397
        %v406 = vmul.f32 %v331, %v401
        %v407 = vmul.f32 %v399, 0.0
        %411 = vrot.lane.b32.xlu0 0.0, 127
        %v412 = vpop.permute.xlu0 %411
        %413 = vrot.lane.b32.xlu0 %v330, 127
        %v414 = vpop.permute.xlu0 %413
        %415 = vrot.lane.b32.xlu0 %v331, 127
        %v416 = vpop.permute.xlu0 %415
        %v417 = vsel %vm364, %v412, %v414
        %v418 = vsel %vm364, %v414, %v416
        %422 = vrot.lane.b32.xlu0 %v357, 126
        %v423 = vpop.permute.xlu0 %422
        %424 = vrot.lane.b32.xlu0 %v358, 126
        %v425 = vpop.permute.xlu0 %424
        %426 = vrot.lane.b32.xlu0 %v359, 126
        %v427 = vpop.permute.xlu0 %426
        %vm428 = vcmask 1031168
        %v429 = vsel %vm428, %v423, %v425
        %v430 = vsel %vm428, %v425, %v427
        %434 = vrot.lane.b32.xlu0 %v369, 112
        %v435 = vpop.permute.xlu0 %434
        %436 = vrot.lane.b32.xlu0 %v370, 112
        %v437 = vpop.permute.xlu0 %436
        %438 = vrot.lane.b32.xlu0 %v371, 112
        %v439 = vpop.permute.xlu0 %438
        %vm440 = vcmask 916480
        %v441 = vsel %vm440, %v435, %v437
        %v442 = vsel %vm440, %v437, %v439
        %443 = vrot.lane.b32.xlu0 %v330, 111
        %v444 = vpop.permute.xlu0 %443
        %445 = vrot.lane.b32.xlu0 %v331, 111
        %v446 = vpop.permute.xlu0 %445
        %v447 = vsel %vm338, %v444, %v446
        %451 = vrot.lane.b32.xlu0 %v381, 110
        %v452 = vpop.permute.xlu0 %451
        %453 = vrot.lane.b32.xlu0 %v382, 110
        %v454 = vpop.permute.xlu0 %453
        %455 = vrot.lane.b32.xlu0 %v383, 110
        %v456 = vpop.permute.xlu0 %455
        %vm457 = vcmask 900096
        %v458 = vsel %vm457, %v452, %v454
        %v459 = vsel %vm457, %v454, %v456
        %463 = vrot.lane.b32.xlu0 %v393, 96
        %v464 = vpop.permute.xlu0 %463
        %465 = vrot.lane.b32.xlu0 %v394, 96
        %v466 = vpop.permute.xlu0 %465
        %467 = vrot.lane.b32.xlu0 %v395, 96
        %v468 = vpop.permute.xlu0 %467
        %vm469 = vcmask 785408
        %v470 = vsel %vm469, %v464, %v466
        %v471 = vsel %vm469, %v466, %v468
        %472 = vrot.lane.b32.xlu0 %v330, 95
        %v473 = vpop.permute.xlu0 %472
        %474 = vrot.lane.b32.xlu0 %v331, 95
        %v475 = vpop.permute.xlu0 %474
        %476 = vrot.lane.b32.xlu0 0.0, 95
        %v477 = vpop.permute.xlu0 %476
        %vm478 = vcmask 777216
        %v479 = vsel %vm478, %v473, %v475
        %v480 = vsel %vm478, %v475, %v477
        %484 = vrot.lane.b32.xlu0 %v405, 94
        %v485 = vpop.permute.xlu0 %484
        %486 = vrot.lane.b32.xlu0 %v406, 94
        %v487 = vpop.permute.xlu0 %486
        %488 = vrot.lane.b32.xlu0 %v407, 94
        %v489 = vpop.permute.xlu0 %488
        %vm490 = vcmask 769024
        %v491 = vsel %vm490, %v485, %v487
        %v492 = vsel %vm490, %v487, %v489
        %v493 = vld [vmem:[%s3] sm:$0xff]
        %v494 = vld [vmem:[%s3 + $0x8] sm:$0xff]
        %v495 = vld [vmem:[%s4] sm:$0xff]
        %v496 = vld [vmem:[%s4 + $0x8] sm:$0xff]
        %498 = vset.pattern.permute.xlu0 0
        %499 = vperm.xlu0 %498, %v495
        %v500 = vpop.permute.xlu0 %499
        %503 = vset.pattern.permute.xlu0 0
        %504 = vperm.xlu0 %503, %v496
        %v505 = vpop.permute.xlu0 %504
        %510 = vrot.lane.b32.xlu0 %v343, 17
        %v511 = vpop.permute.xlu0 %510
        %512 = vrot.lane.b32.xlu0 %v344, 17
        %v513 = vpop.permute.xlu0 %512
        %514 = vrot.lane.b32.xlu0 %v345, 17
        %v515 = vpop.permute.xlu0 %514
        %516 = vrot.lane.b32.xlu0 %v417, 17
        %v517 = vpop.permute.xlu0 %516
        %518 = vrot.lane.b32.xlu0 %v418, 17
        %v519 = vpop.permute.xlu0 %518
        %520 = vrot.lane.b32.xlu0 %v416, 17
        %v521 = vpop.permute.xlu0 %520
        %522 = vrot.lane.b32.xlu0 %v429, 17
        %v523 = vpop.permute.xlu0 %522
        %524 = vrot.lane.b32.xlu0 %v430, 17
        %v525 = vpop.permute.xlu0 %524
        %526 = vrot.lane.b32.xlu0 %v427, 17
        %v527 = vpop.permute.xlu0 %526
        %528 = vrot.lane.b32.xlu0 %v441, 17
        %v529 = vpop.permute.xlu0 %528
        %530 = vrot.lane.b32.xlu0 %v442, 17
        %v531 = vpop.permute.xlu0 %530
        %532 = vrot.lane.b32.xlu0 %v439, 17
        %v533 = vpop.permute.xlu0 %532
        %534 = vrot.lane.b32.xlu0 %v444, 17
        %v535 = vpop.permute.xlu0 %534
        %536 = vrot.lane.b32.xlu0 %v447, 17
        %v537 = vpop.permute.xlu0 %536
        %538 = vrot.lane.b32.xlu0 %v446, 17
        %v539 = vpop.permute.xlu0 %538
        %540 = vrot.lane.b32.xlu0 %v452, 17
        %v541 = vpop.permute.xlu0 %540
        %542 = vrot.lane.b32.xlu0 %v458, 17
        %v543 = vpop.permute.xlu0 %542
        %544 = vrot.lane.b32.xlu0 %v459, 17
        %v545 = vpop.permute.xlu0 %544
        %546 = vrot.lane.b32.xlu0 %v464, 17
        %v547 = vpop.permute.xlu0 %546
        %548 = vrot.lane.b32.xlu0 %v470, 17
        %v549 = vpop.permute.xlu0 %548
        %550 = vrot.lane.b32.xlu0 %v471, 17
        %v551 = vpop.permute.xlu0 %550
        %552 = vrot.lane.b32.xlu0 %v473, 17
        %v553 = vpop.permute.xlu0 %552
        %554 = vrot.lane.b32.xlu0 %v479, 17
        %v555 = vpop.permute.xlu0 %554
        %556 = vrot.lane.b32.xlu0 %v480, 17
        %v557 = vpop.permute.xlu0 %556
        %558 = vrot.lane.b32.xlu0 %v485, 17
        %v559 = vpop.permute.xlu0 %558
        %560 = vrot.lane.b32.xlu0 %v491, 17
        %v561 = vpop.permute.xlu0 %560
        %562 = vrot.lane.b32.xlu0 %v492, 17
        %v563 = vpop.permute.xlu0 %562
        %v564 = vsel %vm400, %v511, %v513
        %v565 = vsel %vm400, %v513, %v515
        %v566 = vsel %vm400, %v517, %v519
        %v567 = vsel %vm400, %v519, %v521
        %v568 = vsel %vm400, %v523, %v525
        %v569 = vsel %vm400, %v525, %v527
        %v570 = vsel %vm400, %v529, %v531
        %v571 = vsel %vm400, %v531, %v533
        %v572 = vsel %vm400, %v535, %v537
        %v573 = vsel %vm400, %v537, %v539
        %v574 = vsel %vm400, %v541, %v543
        %v575 = vsel %vm400, %v543, %v545
        %v576 = vsel %vm400, %v547, %v549
        %v577 = vsel %vm400, %v549, %v551
        %v578 = vsel %vm400, %v553, %v555
        %v579 = vsel %vm400, %v555, %v557
        %v580 = vsel %vm400, %v559, %v561
        %v581 = vsel %vm400, %v561, %v563
        %vm600 = vcmask 588800
        %v602 = vsel %vm600, %v493, 0
        %v605 = vsel %vm600, %v494, 0
        %607 = vmatpush.msra.mxu0 0.0
        %608 = vmatpush.msra.mxu0 0.0
        %609 = vmatpush.msra.mxu0 0.0
        %610 = vmatpush.msra.mxu0 0.0
        %611 = vmatpush.msra.mxu0 0.0
        %612 = vmatpush.msra.mxu0 0.0
        %613 = vmatpush.msra.mxu0 0.0
        %614 = vmatpush.msra.mxu0 %v580
        %615 = vmatpush.msra.mxu0 %v578
        %616 = vmatpush.msra.mxu0 %v576
        %617 = vmatpush.msra.mxu0 %v574
        %618 = vmatpush.msra.mxu0 %v572
        %619 = vmatpush.msra.mxu0 %v570
        %620 = vmatpush.msra.mxu0 %v568
        %621 = vmatpush.msra.mxu0 %v566
        %622 = vmatpush.msra.mxu0 %v564
        %623 = vmatmul.f32.gmra.mxu0 %v602
        %v624 = vpop.f32.mrf.mxu0
        %v625 = vadd.f32 %v500, %v624
        %626 = vmatmul.f32.gmra.mxu0 %v605
        %v627 = vpop.f32.mrf.mxu0
        %v628 = vadd.f32 %v505, %v627
        %629 = vdwg.mxu0
        %630 = vmatpush.msra.mxu0 0.0
        %631 = vmatpush.msra.mxu0 0.0
        %632 = vmatpush.msra.mxu0 0.0
        %633 = vmatpush.msra.mxu0 0.0
        %634 = vmatpush.msra.mxu0 0.0
        %635 = vmatpush.msra.mxu0 0.0
        %636 = vmatpush.msra.mxu0 0.0
        %637 = vmatpush.msra.mxu0 %v581
        %638 = vmatpush.msra.mxu0 %v579
        %639 = vmatpush.msra.mxu0 %v577
        %640 = vmatpush.msra.mxu0 %v575
        %641 = vmatpush.msra.mxu0 %v573
        %642 = vmatpush.msra.mxu0 %v571
        %643 = vmatpush.msra.mxu0 %v569
        %644 = vmatpush.msra.mxu0 %v567
        %645 = vmatpush.msra.mxu0 %v565
        %646 = vmatmul.f32.gmra.mxu0 %v602
        %v647 = vpop.f32.mrf.mxu0
        %v648 = vadd.f32 %v500, %v647
        %649 = vmatmul.f32.gmra.mxu0 %v605
        %v650 = vpop.f32.mrf.mxu0
        %v651 = vadd.f32 %v505, %v650
        %652 = vdwg.mxu0
        %v653 = vmax.f32 %v625, 0.0
        %v654 = vmax.f32 %v648, 0.0
        %v655 = vmax.f32 %v628, 0.0
        %v656 = vmax.f32 %v651, 0.0
        %657 = vst [vmem:[%s220] sm:$0xff] %v653
        %658 = vst [vmem:[%s220 + $0x8] sm:$0xff] %v654
        %659 = vst [vmem:[%s220 + $0x10] sm:$0xff] %v655
        %660 = vst [vmem:[%s220 + $0x18] sm:$0xff] %v656
        %s661 = scalar_lea.vmem %s226, 32
        %v662 = vld [vmem:[%s661] sm:$0xff]
        %v663 = vld [vmem:[%s661 + $0x8] sm:$0xff]
        %v664 = vld [vmem:[%s661 + $0x10] sm:$0xf]
        %v665 = vld [vmem:[%s661 + $0x18] sm:$0xf]
        %v666 = vld [vmem:[%s1] sm:$0xff]
        %v667 = vld [vmem:[%s2] sm:$0xff]
        %669 = vset.pattern.permute.xlu0 0
        %670 = vperm.xlu0 %669, %v667
        %v671 = vpop.permute.xlu0 %670
        %v674 = vsel %vm279, %v666, 0
        %v677 = vsel %vm283, %v664, 0
        %v680 = vsel %vm283, %v665, 0
        %682 = vmatpush.msra.mxu0 0.0
        %683 = vmatpush.msra.mxu0 0.0
        %684 = vmatpush.msra.mxu0 0.0
        %685 = vmatpush.msra.mxu0 0.0
        %686 = vmatpush.msra.mxu0 0.0
        %687 = vmatpush.msra.mxu0 0.0
        %688 = vmatpush.msra.mxu0 0.0
        %689 = vmatpush.msra.mxu0 0.0
        %690 = vmatpush.msra.mxu0 0.0
        %691 = vmatpush.msra.mxu0 0.0
        %692 = vmatpush.msra.mxu0 0.0
        %693 = vmatpush.msra.mxu0 0.0
        %694 = vmatpush.msra.mxu0 0.0
        %695 = vmatpush.msra.mxu0 0.0
        %696 = vmatpush.msra.mxu0 %v677
        %697 = vmatpush.msra.mxu0 %v662
        %698 = vmatmul.f32.gmra.mxu0 %v674
        %v699 = vpop.f32.mrf.mxu0
        %v700 = vadd.f32 %v671, %v699
        %701 = vdwg.mxu0
        %702 = vmatpush.msra.mxu0 0.0
        %703 = vmatpush.msra.mxu0 0.0
        %704 = vmatpush.msra.mxu0 0.0
        %705 = vmatpush.msra.mxu0 0.0
        %706 = vmatpush.msra.mxu0 0.0
        %707 = vmatpush.msra.mxu0 0.0
        %708 = vmatpush.msra.mxu0 0.0
        %709 = vmatpush.msra.mxu0 0.0
        %710 = vmatpush.msra.mxu0 0.0
        %711 = vmatpush.msra.mxu0 0.0
        %712 = vmatpush.msra.mxu0 0.0
        %713 = vmatpush.msra.mxu0 0.0
        %714 = vmatpush.msra.mxu0 0.0
        %715 = vmatpush.msra.mxu0 0.0
        %716 = vmatpush.msra.mxu0 %v680
        %717 = vmatpush.msra.mxu0 %v663
        %718 = vmatmul.f32.gmra.mxu0 %v674
        %v719 = vpop.f32.mrf.mxu0
        %v720 = vadd.f32 %v671, %v719
        %721 = vdwg.mxu0
        %v722 = vmax.f32 %v700, 0.0
        %v723 = vmax.f32 %v720, 0.0
        %v724 = vmul.f32 %v722, %v339
        %v725 = vmul.f32 %v723, %v337
        %v726 = vmul.f32 %v722, %v353
        %v727 = vmul.f32 %v723, %v351
        %v728 = vmul.f32 %v722, %v365
        %v729 = vmul.f32 %v723, %v363
        %v730 = vmul.f32 %v722, %v373
        %v731 = vmul.f32 %v723, %v377
        %v732 = vmul.f32 %v722, %v385
        %v733 = vmul.f32 %v723, %v389
        %v734 = vmul.f32 %v722, %v397
        %v735 = vmul.f32 %v723, %v401
        %738 = vrot.lane.b32.xlu0 %v722, 127
        %v739 = vpop.permute.xlu0 %738
        %740 = vrot.lane.b32.xlu0 %v723, 127
        %v741 = vpop.permute.xlu0 %740
        %v742 = vsel %vm364, %v412, %v739
        %v743 = vsel %vm364, %v739, %v741
        %746 = vrot.lane.b32.xlu0 %v726, 126
        %v747 = vpop.permute.xlu0 %746
        %748 = vrot.lane.b32.xlu0 %v727, 126
        %v749 = vpop.permute.xlu0 %748
        %v750 = vsel %vm428, %v423, %v747
        %v751 = vsel %vm428, %v747, %v749
        %754 = vrot.lane.b32.xlu0 %v728, 112
        %v755 = vpop.permute.xlu0 %754
        %756 = vrot.lane.b32.xlu0 %v729, 112
        %v757 = vpop.permute.xlu0 %756
        %v758 = vsel %vm440, %v435, %v755
        %v759 = vsel %vm440, %v755, %v757
        %760 = vrot.lane.b32.xlu0 %v722, 111
        %v761 = vpop.permute.xlu0 %760
        %762 = vrot.lane.b32.xlu0 %v723, 111
        %v763 = vpop.permute.xlu0 %762
        %v764 = vsel %vm338, %v761, %v763
        %767 = vrot.lane.b32.xlu0 %v730, 110
        %v768 = vpop.permute.xlu0 %767
        %769 = vrot.lane.b32.xlu0 %v731, 110
        %v770 = vpop.permute.xlu0 %769
        %v771 = vsel %vm457, %v768, %v770
        %v772 = vsel %vm457, %v770, %v456
        %775 = vrot.lane.b32.xlu0 %v732, 96
        %v776 = vpop.permute.xlu0 %775
        %777 = vrot.lane.b32.xlu0 %v733, 96
        %v778 = vpop.permute.xlu0 %777
        %v779 = vsel %vm469, %v776, %v778
        %v780 = vsel %vm469, %v778, %v468
        %781 = vrot.lane.b32.xlu0 %v722, 95
        %v782 = vpop.permute.xlu0 %781
        %783 = vrot.lane.b32.xlu0 %v723, 95
        %v784 = vpop.permute.xlu0 %783
        %v785 = vsel %vm478, %v782, %v784
        %v786 = vsel %vm478, %v784, %v477
        %789 = vrot.lane.b32.xlu0 %v734, 94
        %v790 = vpop.permute.xlu0 %789
        %791 = vrot.lane.b32.xlu0 %v735, 94
        %v792 = vpop.permute.xlu0 %791
        %v793 = vsel %vm490, %v790, %v792
        %v794 = vsel %vm490, %v792, %v489
        %v795 = vld [vmem:[%s3] sm:$0xff]
        %v796 = vld [vmem:[%s3 + $0x8] sm:$0xff]
        %v797 = vld [vmem:[%s4] sm:$0xff]
        %v798 = vld [vmem:[%s4 + $0x8] sm:$0xff]
        %800 = vset.pattern.permute.xlu0 0
        %801 = vperm.xlu0 %800, %v797
        %v802 = vpop.permute.xlu0 %801
        %805 = vset.pattern.permute.xlu0 0
        %806 = vperm.xlu0 %805, %v798
        %v807 = vpop.permute.xlu0 %806
        %811 = vrot.lane.b32.xlu0 %v724, 17
        %v812 = vpop.permute.xlu0 %811
        %813 = vrot.lane.b32.xlu0 %v725, 17
        %v814 = vpop.permute.xlu0 %813
        %815 = vrot.lane.b32.xlu0 %v742, 17
        %v816 = vpop.permute.xlu0 %815
        %817 = vrot.lane.b32.xlu0 %v743, 17
        %v818 = vpop.permute.xlu0 %817
        %819 = vrot.lane.b32.xlu0 %v741, 17
        %v820 = vpop.permute.xlu0 %819
        %821 = vrot.lane.b32.xlu0 %v750, 17
        %v822 = vpop.permute.xlu0 %821
        %823 = vrot.lane.b32.xlu0 %v751, 17
        %v824 = vpop.permute.xlu0 %823
        %825 = vrot.lane.b32.xlu0 %v749, 17
        %v826 = vpop.permute.xlu0 %825
        %827 = vrot.lane.b32.xlu0 %v758, 17
        %v828 = vpop.permute.xlu0 %827
        %829 = vrot.lane.b32.xlu0 %v759, 17
        %v830 = vpop.permute.xlu0 %829
        %831 = vrot.lane.b32.xlu0 %v757, 17
        %v832 = vpop.permute.xlu0 %831
        %833 = vrot.lane.b32.xlu0 %v761, 17
        %v834 = vpop.permute.xlu0 %833
        %835 = vrot.lane.b32.xlu0 %v764, 17
        %v836 = vpop.permute.xlu0 %835
        %837 = vrot.lane.b32.xlu0 %v763, 17
        %v838 = vpop.permute.xlu0 %837
        %839 = vrot.lane.b32.xlu0 %v768, 17
        %v840 = vpop.permute.xlu0 %839
        %841 = vrot.lane.b32.xlu0 %v771, 17
        %v842 = vpop.permute.xlu0 %841
        %843 = vrot.lane.b32.xlu0 %v772, 17
        %v844 = vpop.permute.xlu0 %843
        %845 = vrot.lane.b32.xlu0 %v776, 17
        %v846 = vpop.permute.xlu0 %845
        %847 = vrot.lane.b32.xlu0 %v779, 17
        %v848 = vpop.permute.xlu0 %847
        %849 = vrot.lane.b32.xlu0 %v780, 17
        %v850 = vpop.permute.xlu0 %849
        %851 = vrot.lane.b32.xlu0 %v782, 17
        %v852 = vpop.permute.xlu0 %851
        %853 = vrot.lane.b32.xlu0 %v785, 17
        %v854 = vpop.permute.xlu0 %853
        %855 = vrot.lane.b32.xlu0 %v786, 17
        %v856 = vpop.permute.xlu0 %855
        %857 = vrot.lane.b32.xlu0 %v790, 17
        %v858 = vpop.permute.xlu0 %857
        %859 = vrot.lane.b32.xlu0 %v793, 17
        %v860 = vpop.permute.xlu0 %859
        %861 = vrot.lane.b32.xlu0 %v794, 17
        %v862 = vpop.permute.xlu0 %861
        %v863 = vsel %vm400, %v511, %v812
        %v864 = vsel %vm400, %v812, %v814
        %v865 = vsel %vm400, %v816, %v818
        %v866 = vsel %vm400, %v818, %v820
        %v867 = vsel %vm400, %v822, %v824
        %v868 = vsel %vm400, %v824, %v826
        %v869 = vsel %vm400, %v828, %v830
        %v870 = vsel %vm400, %v830, %v832
        %v871 = vsel %vm400, %v834, %v836
        %v872 = vsel %vm400, %v836, %v838
        %v873 = vsel %vm400, %v840, %v842
        %v874 = vsel %vm400, %v842, %v844
        %v875 = vsel %vm400, %v846, %v848
        %v876 = vsel %vm400, %v848, %v850
        %v877 = vsel %vm400, %v852, %v854
        %v878 = vsel %vm400, %v854, %v856
        %v879 = vsel %vm400, %v858, %v860
        %v880 = vsel %vm400, %v860, %v862
        %v900 = vsel %vm600, %v795, 0
        %v903 = vsel %vm600, %v796, 0
        %905 = vmatpush.msra.mxu0 0.0
        %906 = vmatpush.msra.mxu0 0.0
        %907 = vmatpush.msra.mxu0 0.0
        %908 = vmatpush.msra.mxu0 0.0
        %909 = vmatpush.msra.mxu0 0.0
        %910 = vmatpush.msra.mxu0 0.0
        %911 = vmatpush.msra.mxu0 0.0
        %912 = vmatpush.msra.mxu0 %v879
        %913 = vmatpush.msra.mxu0 %v877
        %914 = vmatpush.msra.mxu0 %v875
        %915 = vmatpush.msra.mxu0 %v873
        %916 = vmatpush.msra.mxu0 %v871
        %917 = vmatpush.msra.mxu0 %v869
        %918 = vmatpush.msra.mxu0 %v867
        %919 = vmatpush.msra.mxu0 %v865
        %920 = vmatpush.msra.mxu0 %v863
        %921 = vmatmul.f32.gmra.mxu0 %v900
        %v922 = vpop.f32.mrf.mxu0
        %v923 = vadd.f32 %v802, %v922
        %924 = vmatmul.f32.gmra.mxu0 %v903
        %v925 = vpop.f32.mrf.mxu0
        %v926 = vadd.f32 %v807, %v925
        %927 = vdwg.mxu0
        %928 = vmatpush.msra.mxu0 0.0
        %929 = vmatpush.msra.mxu0 0.0
        %930 = vmatpush.msra.mxu0 0.0
        %931 = vmatpush.msra.mxu0 0.0
        %932 = vmatpush.msra.mxu0 0.0
        %933 = vmatpush.msra.mxu0 0.0
        %934 = vmatpush.msra.mxu0 0.0
        %935 = vmatpush.msra.mxu0 %v880
        %936 = vmatpush.msra.mxu0 %v878
        %937 = vmatpush.msra.mxu0 %v876
        %938 = vmatpush.msra.mxu0 %v874
        %939 = vmatpush.msra.mxu0 %v872
        %940 = vmatpush.msra.mxu0 %v870
        %941 = vmatpush.msra.mxu0 %v868
        %942 = vmatpush.msra.mxu0 %v866
        %943 = vmatpush.msra.mxu0 %v864
        %944 = vmatmul.f32.gmra.mxu0 %v900
        %v945 = vpop.f32.mrf.mxu0
        %v946 = vadd.f32 %v802, %v945
        %947 = vmatmul.f32.gmra.mxu0 %v903
        %v948 = vpop.f32.mrf.mxu0
        %v949 = vadd.f32 %v807, %v948
        %950 = vdwg.mxu0
        %v951 = vmax.f32 %v923, 0.0
        %v952 = vmax.f32 %v946, 0.0
        %v953 = vmax.f32 %v926, 0.0
        %v954 = vmax.f32 %v949, 0.0
        %s955 = scalar_lea.vmem %s220, 32 [#allocation2]
        %956 = vst [vmem:[%s955] sm:$0xff] %v951
        %957 = vst [vmem:[%s955 + $0x8] sm:$0xff] %v952
        %958 = vst [vmem:[%s955 + $0x10] sm:$0xff] %v953
        %959 = vst [vmem:[%s955 + $0x18] sm:$0xff] %v954
        %s960 = sand.u32 %s137, 1
        %s961 = scalar_lea.sflag [#allocation3], %s960
        %s962 = sand.u32 %s137, 1
        %s963 = smul.addr %s962, 64
        %s964 = scalar_lea.vmem [#allocation2], %s963
        // Predicated region
        $region41: #{tpu_custom_call.1} parent=39 // pred_check
          %p965 = pneg %p147
        $region42: #{tpu_custom_call.1} parent=39 // pred_check_branch
          %967 = sbr.rel (%p965) target = $region44
        $region43: #{tpu_custom_call.1} parent=39 // pred_region
          %s968 = smul.u32 2, %s19
          %970 = vsyncadd %s961, 0
          %s971 = smul.addr %s968, 4
          %s972 = smul.addr %s971, 8
          %s973 = scalar_lea.hbm %s5, %s972
          %s974 = sshll.u32 %s964, 4
          %s975 = int_to_ptr.vmem [resolvable:$true] %s974
          %s976 = sshll.u32 %s973, 4
          %s977 = int_to_ptr.hbm [resolvable:$true] %s976
          %982 = dma.vmem_to_hbm [thread:$0]  %s975, 1024, %s977, %s961, 256, 256, 16
        $region44: #{tpu_custom_call.1} parent=39 // pred_fallthru
          _
      $region40: #{tpu_custom_call.1} parent=5 // pred_fallthru
        _
      %p983 = scmp.le.s32.totalorder 2, %s14
      // Predicated region
      $region45: #{tpu_custom_call.1} parent=5 // pred_check
        %p984 = pneg %p983
      $region46: #{tpu_custom_call.1} parent=5 // pred_check_branch
        %986 = sbr.rel (%p984) target = $region48
      $region47: #{tpu_custom_call.1} parent=5 // pred_region
        %s987 = ssub.s32 %s14, 2
        // Predicated region
        $region49: #{tpu_custom_call.1} parent=47 // pred_check
          %p988 = pneg %p153
        $region50: #{tpu_custom_call.1} parent=47 // pred_check_branch
          %990 = sbr.rel (%p988) target = $region52
        $region51: #{tpu_custom_call.1} parent=47 // pred_region
          %s991 = sand.u32 %s138, 1
          %s992 = scalar_lea.sflag [#allocation3], %s991
          %s993 = sand.u32 %s138, 1
          %s994 = smul.addr %s993, 64
          %s995 = scalar_lea.vmem [#allocation2], %s994
          %997 = dma.done %s992, 1024
        $region52: #{tpu_custom_call.1} parent=47 // pred_fallthru
          _
      $region48: #{tpu_custom_call.1} parent=5 // pred_fallthru
        _
    $region6: #{tpu_custom_call.1} parent=1 // loop_footer
      %s18 = sadd.s32 1, %s14
    $region7: #{tpu_custom_call.1} parent=1 // loop_footer_branch
      %13 = sbr.rel target = $region3
    $region8: #{tpu_custom_call.1} parent=1 // loop_exit
      _
    %998 = vsyncpa [#allocation3], 1
    %s999 = scalar_lea.sflag [#allocation3], 1
    %1000 = vsyncpa %s999, 1

</llo_original>
